<compile_context>
chip_gen: v7x
topology: tpu7x:2x2x1
jax: 0.10.0
libtpu: 0.0.40
codegen_flags: <defaults>
</compile_context>

<pallas_src>
import functools

import jax
import jax.numpy as jnp
from jax.experimental import pallas as pl
from jax.experimental.pallas import tpu as pltpu

LANE = 128      # lane width: pad n_class to this
SUBLANE = 8     # sublane width: pad batch to a multiple of this
TK = 512        # K-reduction tile size


def _round_up(x, m):
    return ((x + m - 1) // m) * m


def fold_classifier_params(weight, bias, im_mean, im_std, *, channels, height, width):
    """One-time parameter prep (outside jit / per weight update).

    Folds the NCHW per-channel normalization into the classifier:
        logits = ((x - mean) / std) @ W + b
               = x @ (diag(1/std_flat) @ W) + (b - (mean_flat/std_flat) @ W)
    Pads D to a multiple of TK and n_class to a lane width; casts W' to bf16
    (f32 accumulation happens in-kernel), keeps b' in f32.
    """
    D = channels * height * width
    n_class = weight.shape[1]
    w = weight.astype(jnp.float32)
    b = bias.astype(jnp.float32)

    if im_mean is not None and im_std is not None:
        hw = height * width
        inv_std_flat = jnp.repeat(1.0 / im_std.astype(jnp.float32), hw)   # [D]
        mean_flat = jnp.repeat(im_mean.astype(jnp.float32), hw)           # [D]
        w = w * inv_std_flat[:, None]
        b = b - (mean_flat * inv_std_flat) @ weight.astype(jnp.float32)

    d_pad = _round_up(D, TK)
    n_pad = _round_up(max(n_class, LANE), LANE)

    w_pad = jnp.zeros((d_pad, n_pad), jnp.float32).at[:D, :n_class].set(w)
    b_pad = jnp.zeros((1, n_pad), jnp.float32).at[0, :n_class].set(b)

    return w_pad.astype(jnp.bfloat16), b_pad


def _folded_classifier_kernel(x_ref, w_ref, b_ref, o_ref, acc_ref):
    """Pure GEMM with K-tiled reduction.

    x_ref:   [tb, TK]      f32  input tile (normalization pre-folded into W')
    w_ref:   [TK, Npad]    bf16 folded/padded weight tile
    b_ref:   [1, Npad]     f32  folded bias
    o_ref:   [tb, Npad]    f32  logits (padded)
    acc_ref: [tb, Npad]    f32  VMEM accumulator scratch
    """
    k = pl.program_id(1)

    @pl.when(k == 0)
    def _():
        acc_ref[...] = jnp.zeros_like(acc_ref)

    acc_ref[...] += jnp.dot(
        x_ref[...].astype(jnp.bfloat16),
        w_ref[...],
        preferred_element_type=jnp.float32,
    )

    @pl.when(k == pl.num_programs(1) - 1)
    def _():
        o_ref[...] = acc_ref[...] + b_ref[...]


@functools.partial(jax.jit, static_argnames=("n_class",))
def general_torch_model_forward(image, w_folded, b_folded, *, n_class):
    """JAX/Pallas equivalent of GeneralTorchModel.forward.

    image:    [B, C, H, W] (NCHW); a batch dim is added if 3-D (unsqueeze(0)).
    w_folded: [Dpad, Npad] bf16 — from fold_classifier_params (normalization folded in).
    b_folded: [1, Npad]    f32  — folded bias.
    returns:  [B, n_class] f32 logits.
    """
    if image.ndim != 4:
        image = image[None, ...]  # unsqueeze(0)

    B, C, H, W = image.shape
    D = C * H * W
    d_pad, n_pad = w_folded.shape

    x = image.reshape(B, D).astype(jnp.float32)

    # Pad batch to a sublane multiple (unmasked vld/vst) and D to the K tile.
    tb = LANE if B >= LANE else _round_up(B, SUBLANE)
    b_rows = _round_up(B, tb)
    x = jnp.pad(x, ((0, b_rows - B), (0, d_pad - D)))

    nb = b_rows // tb
    nk = d_pad // TK

    logits_pad = pl.pallas_call(
        _folded_classifier_kernel,
        out_shape=jax.ShapeDtypeStruct((b_rows, n_pad), jnp.float32),
        grid=(nb, nk),
        in_specs=[
            pl.BlockSpec((tb, TK), lambda b, k: (b, k)),       # x
            pl.BlockSpec((TK, n_pad), lambda b, k: (k, 0)),    # W'
            pl.BlockSpec((1, n_pad), lambda b, k: (0, 0)),     # b'
        ],
        out_specs=pl.BlockSpec((tb, n_pad), lambda b, k: (b, 0)),
        scratch_shapes=[pltpu.VMEM((tb, n_pad), jnp.float32)],
        compiler_params=pltpu.CompilerParams(
            dimension_semantics=("parallel", "arbitrary"),
            vmem_limit_bytes=16 << 20,
        ),
    )(x, w_folded, b_folded)

    return logits_pad[:B, :n_class]


if __name__ == "__main__":
    # Small shapes consistent with the module: batch=2, channels=4, spatial=16x16,
    # n_class=10.
    B, C, H, W = 2, 4, 16, 16
    n_class = 10
    D = C * H * W

    key = jax.random.PRNGKey(0)
    k_img, k_w, k_b = jax.random.split(key, 3)

    image = jax.random.uniform(k_img, (B, C, H, W), dtype=jnp.float32)

    # Deterministic per-channel stats (CIFAR-style im_mean / im_std).
    im_mean = jnp.array([0.5, 0.4, 0.45, 0.55], dtype=jnp.float32)
    im_std = jnp.array([0.25, 0.2, 0.3, 0.22], dtype=jnp.float32)

    # Deterministic synthetic classifier parameters (self.model).
    weight = jax.random.normal(k_w, (D, n_class), dtype=jnp.float32) * 0.02
    bias = jax.random.normal(k_b, (n_class,), dtype=jnp.float32) * 0.01

    # One-time parameter prep: fold normalization + pad + cast to bf16.
    w_folded, b_folded = fold_classifier_params(
        weight, bias, im_mean, im_std, channels=C, height=H, width=W
    )
    w_folded, b_folded = jax.block_until_ready((w_folded, b_folded))

    logits = general_torch_model_forward(
        image, w_folded, b_folded, n_class=n_class
    )
    logits = jax.block_until_ready(logits)

    # Reference check in plain JAX (original module semantics, f32).
    xn = (image - im_mean[None, :, None, None]) / im_std[None, :, None, None]
    ref = xn.reshape(B, D) @ weight + bias
    assert logits.shape == (B, n_class)
    # Tolerance accounts for the bf16-quantized folded weight.
    assert jnp.allclose(logits, ref, atol=5e-2, rtol=5e-2), (
        float(jnp.max(jnp.abs(logits - ref)))
    )

    print("KERNEL_OK")
</pallas_src>

<mosaic_0001>
module attributes {stable_mosaic.version = 11 : i64} {
  func.func @_folded_classifier_kernel(%arg0: i32, %arg1: i32, %arg2: memref<8x512xf32, #tpu.memory_space<vmem>>, %arg3: memref<512x128xbf16, #tpu.memory_space<vmem>>, %arg4: memref<1x128xf32, #tpu.memory_space<vmem>>, %arg5: memref<8x128xf32, #tpu.memory_space<vmem>>, %arg6: memref<8x128xf32, #tpu.memory_space<vmem>>) attributes {dimension_semantics = [#tpu.dimension_semantics<parallel>, #tpu.dimension_semantics<arbitrary>], iteration_bounds = array<i64: 1, 2>, scalar_prefetch = 0 : i64, scratch_operands = 1 : i64, tpu.core_type = #tpu.core_type<tc>, window_params = [{transform_indices = @transform_0, window_bounds = array<i64: 8, 512>}, {transform_indices = @transform_1, window_bounds = array<i64: 512, 128>}, {pipeline_mode = #tpu.pipeline_mode<synchronous>, transform_indices = @transform_2, window_bounds = array<i64: 1, 128>}, {transform_indices = @transform_3, window_bounds = array<i64: 8, 128>}]} {
    %c0_i32 = arith.constant 0 : i32
    %0 = arith.cmpi eq, %arg1, %c0_i32 : i32
    %1 = arith.extui %0 : i1 to i32
    %c0_i32_0 = arith.constant 0 : i32
    %2 = arith.cmpi ne, %1, %c0_i32_0 : i32
    scf.if %2 {
      %cst_9 = arith.constant 0.000000e+00 : f32
      %13 = vector.broadcast %cst_9 : f32 to vector<8x128xf32>
      %c0_10 = arith.constant 0 : index
      %c0_11 = arith.constant 0 : index
      %14 = vector.load %arg6[%c0_10, %c0_11] : memref<8x128xf32, #tpu.memory_space<vmem>>, vector<8x128xf32>
      tpu.vector_store %arg6[%c0_10, %c0_11], %13 {strides = array<i32>} : memref<8x128xf32, #tpu.memory_space<vmem>>, vector<8x128xf32>,
    } else {
    }
    %c0 = arith.constant 0 : index
    %c0_1 = arith.constant 0 : index
    %3 = vector.load %arg6[%c0, %c0_1] : memref<8x128xf32, #tpu.memory_space<vmem>>, vector<8x128xf32>
    %c0_2 = arith.constant 0 : index
    %c0_3 = arith.constant 0 : index
    %4 = vector.load %arg2[%c0_2, %c0_3] : memref<8x512xf32, #tpu.memory_space<vmem>>, vector<8x512xf32>
    %5 = arith.truncf %4 : vector<8x512xf32> to vector<8x512xbf16>
    %c0_4 = arith.constant 0 : index
    %c0_5 = arith.constant 0 : index
    %6 = vector.load %arg3[%c0_4, %c0_5] : memref<512x128xbf16, #tpu.memory_space<vmem>>, vector<512x128xbf16>
    %cst = arith.constant dense<0.000000e+00> : vector<8x128xf32>
    %7 = tpu.matmul %5, %6, %cst {dimension_numbers = #tpu.dot_dimension_numbers<[1], [0], [0], [1], [0, 0, 1, 1], [], []>} : vector<8x512xbf16>, vector<512x128xbf16>, vector<8x128xf32> -> vector<8x128xf32>
    %8 = arith.addf %3, %7 : vector<8x128xf32>
    %c0_6 = arith.constant 0 : index
    %c0_7 = arith.constant 0 : index
    %9 = vector.load %arg6[%c0_6, %c0_7] : memref<8x128xf32, #tpu.memory_space<vmem>>, vector<8x128xf32>
    tpu.vector_store %arg6[%c0_6, %c0_7], %8 {strides = array<i32>} : memref<8x128xf32, #tpu.memory_space<vmem>>, vector<8x128xf32>,
    %c1_i32 = arith.constant 1 : i32
    %10 = arith.cmpi eq, %arg1, %c1_i32 : i32
    %11 = arith.extui %10 : i1 to i32
    %c0_i32_8 = arith.constant 0 : i32
    %12 = arith.cmpi ne, %11, %c0_i32_8 : i32
    scf.if %12 {
      %c0_9 = arith.constant 0 : index
      %c0_10 = arith.constant 0 : index
      %13 = vector.load %arg6[%c0_9, %c0_10] : memref<8x128xf32, #tpu.memory_space<vmem>>, vector<8x128xf32>
      %c0_11 = arith.constant 0 : index
      %c0_12 = arith.constant 0 : index
      %14 = vector.load %arg4[%c0_11, %c0_12] : memref<1x128xf32, #tpu.memory_space<vmem>>, vector<1x128xf32>
      %15 = vector.broadcast %14 : vector<1x128xf32> to vector<8x128xf32>
      %16 = arith.addf %13, %15 : vector<8x128xf32>
      %c0_13 = arith.constant 0 : index
      %c0_14 = arith.constant 0 : index
      %17 = vector.load %arg5[%c0_13, %c0_14] : memref<8x128xf32, #tpu.memory_space<vmem>>, vector<8x128xf32>
      tpu.vector_store %arg5[%c0_13, %c0_14], %16 {strides = array<i32>} : memref<8x128xf32, #tpu.memory_space<vmem>>, vector<8x128xf32>,
    } else {
    }
    return
  }
  func.func @transform_0(%arg0: i32, %arg1: i32) -> (i32, i32) {
    %c0_i32 = arith.constant 0 : i32
    return %arg0, %arg1 : i32, i32
  }
  func.func @transform_1(%arg0: i32, %arg1: i32) -> (i32, i32) {
    %c0_i32 = arith.constant 0 : i32
    %c0_i32_0 = arith.constant 0 : i32
    return %arg1, %c0_i32 : i32, i32
  }
  func.func @transform_2(%arg0: i32, %arg1: i32) -> (i32, i32) {
    %c0_i32 = arith.constant 0 : i32
    %c0_i32_0 = arith.constant 0 : i32
    %c0_i32_1 = arith.constant 0 : i32
    return %c0_i32, %c0_i32_0 : i32, i32
  }
  func.func @transform_3(%arg0: i32, %arg1: i32) -> (i32, i32) {
    %c0_i32 = arith.constant 0 : i32
    %c0_i32_0 = arith.constant 0 : i32
    return %arg0, %c0_i32 : i32, i32
  }
}

</mosaic_0001>

<llo_original>
// kernel: general_torch_model_forward.1
$region0: #{general_torch_model_forward.1}
  #allocation0 [shape = 'u32[]', space=smem, size = 0x4, offset = 0x4, fixed_abs, tag = 'smem constant byte address 0x4 - core index']
  #allocation1 [shape = 'u32[144,128]{1,0:T(1,128)}', space=vmem, size = 0x12000, scoped, tag = 'internal scratch']
  #allocation2 [shape = 'f32[8,128]{1,0:T(8,128)}', space=vmem, size = 0x1000, scoped, tag = 'scratch operand']
  %s0 = inlined_call_operand.vmem [shape: f32[8,1024], index: 0, kind: input, shape index: {}]
  %s1 = inlined_call_operand.hbm [shape: bf16[1024,128], index: 1, kind: input, shape index: {}]
  %s2 = inlined_call_operand.vmem [shape: f32[1,128], index: 2, kind: input, shape index: {}]
  %s3 = inlined_call_operand.vmem [shape: f32[8,128], index: 3, kind: output, shape index: {}]
  %s4 = sld [smem:[#allocation0]]
  $region57: #{general_torch_model_forward.1} parent=0
    _
  %s6 = ssub.s32 1, %s4
  %s7 = scalar_select 0, %s6, %s4
  $region1: #{general_torch_model_forward.1} parent=0
    #allocation3 [shape = 'u8[262144]{0}', space=vmem, size = 0x40000, scoped, tag = 'input window, operand 1']
    #allocation4 [shape = 's32[2]{0}', space=sflag, size = 0x8, scoped, tag = 'scoped memory for general_torch_model_forward.1']
    %8 = vsyncpa [#allocation4], 0
    %s9 = scalar_lea.sflag [#allocation4], 1
    %10 = vsyncpa %s9, 0
    loop: start=0, step=1, limit=4
    $region2: #{general_torch_model_forward.1} parent=1 // loop_pre_header
      _
    $region3: #{general_torch_model_forward.1} parent=1 // loop_header
      %s12 = sphi 0, %s16
      %p13 = scmp.ge.s32.totalorder %s12, 4
      %s19 = sphi 0, %s31
      %s20 = sphi 0, %s27
      %s21 = sphi 0, %s19
      %s22 = sphi 0, %s20
      %s23 = sphi 0, %s21
      %s24 = sphi 0, %s22
      %s36 = sphi 0, %s38
      %s39 = sphi 0, %s36
      %s40 = sphi 0, %s39
      %s56 = sphi 0, %s40
      %s62 = sphi 0, %s64
      %s65 = sphi 0, %s62
      %s66 = sphi 0, %s65
      %s82 = sphi 0, %s66
      %s86 = sphi 0, %s86
      %s88 = sphi 0, %s86
      %s89 = sphi 0, %s88
      %s103 = sphi 0, %s89
      %s109 = sphi 0, %s111
      %s112 = sphi 0, %s109
      %s113 = sphi 0, %s112
      %s129 = sphi 0, %s113
    $region4: #{general_torch_model_forward.1} parent=1 // loop_header_branch
      %15 = sbr.rel (%p13) target = $region8
    $region5: #{general_torch_model_forward.1} parent=1 // loop_body
      %s17 = ssub.s32 %s12, 1
      %s18 = ssub.s32 %s12, 2
      %s25 = sadd.s32 1, %s20
      %p26 = scmp.ge.s32.totalorder %s25, 2
      %s27 = scalar_select %p26, 0, %s25
      %s28 = sadd.s32 1, %s19
      %s29 = scalar_select %p26, %s28, %s19
      %p30 = scmp.ge.s32.totalorder %s29, 1
      %s31 = scalar_select %p30, 0, %s29
      %s32 = ssub.s32 %s19, %s31
      %s33 = ssub.s32 %s20, %s27
      %s34 = sor.u32 %s32, %s33
      %p35 = scmp.eq.s32.totalorder %s34, 0
      %s37 = sadd.s32 %s36, 1
      %s38 = scalar_select %p35, %s36, %s37
      %p41 = pneg %p35
      %p42 = scmp.eq.s32.totalorder %s12, 1
      %p43 = por %p41, %p42
      %p44 = scmp.ne.s32.totalorder %s36, %s39
      %p45 = scmp.eq.s32.totalorder %s12, 0
      %p46 = por %p44, %p45
      %p47 = scmp.ne.s32.totalorder %s36, %s39
      %p48 = scmp.eq.s32.totalorder %s17, 1
      %p49 = por %p47, %p48
      %p50 = scmp.ne.s32.totalorder %s39, %s40
      %p51 = scmp.eq.s32.totalorder %s17, 0
      %p52 = por %p50, %p51
      %p53 = scmp.ne.s32.totalorder %s39, %s40
      %p54 = scmp.eq.s32.totalorder %s18, 1
      %p55 = por %p53, %p54
      %p57 = scmp.ne.s32.totalorder %s40, %s56
      %p58 = scmp.eq.s32.totalorder %s18, 0
      %p59 = por %p57, %p58
      %s60 = ssub.s32 %s20, %s27
      %p61 = scmp.eq.s32.totalorder %s60, 0
      %s63 = sadd.s32 %s62, 1
      %s64 = scalar_select %p61, %s62, %s63
      %p67 = pneg %p61
      %p68 = scmp.eq.s32.totalorder %s12, 1
      %p69 = por %p67, %p68
      %p70 = scmp.ne.s32.totalorder %s62, %s65
      %p71 = scmp.eq.s32.totalorder %s12, 0
      %p72 = por %p70, %p71
      %p73 = scmp.ne.s32.totalorder %s62, %s65
      %p74 = scmp.eq.s32.totalorder %s17, 1
      %p75 = por %p73, %p74
      %p76 = scmp.ne.s32.totalorder %s65, %s66
      %p77 = scmp.eq.s32.totalorder %s17, 0
      %p78 = por %p76, %p77
      %p79 = scmp.ne.s32.totalorder %s65, %s66
      %p80 = scmp.eq.s32.totalorder %s18, 1
      %p81 = por %p79, %p80
      %p83 = scmp.ne.s32.totalorder %s66, %s82
      %p84 = scmp.eq.s32.totalorder %s18, 0
      %p85 = por %p83, %p84
      %s87 = sadd.s32 %s86, 1
      %p90 = scmp.eq.s32.totalorder %s12, 1
      %p91 = scmp.ne.s32.totalorder %s86, %s88
      %p92 = scmp.eq.s32.totalorder %s12, 0
      %p93 = por %p91, %p92
      %p94 = scmp.ne.s32.totalorder %s86, %s88
      %p95 = scmp.eq.s32.totalorder %s17, 1
      %p96 = por %p94, %p95
      %p97 = scmp.ne.s32.totalorder %s88, %s89
      %p98 = scmp.eq.s32.totalorder %s17, 0
      %p99 = por %p97, %p98
      %p100 = scmp.ne.s32.totalorder %s88, %s89
      %p101 = scmp.eq.s32.totalorder %s18, 1
      %p102 = por %p100, %p101
      %p104 = scmp.ne.s32.totalorder %s89, %s103
      %p105 = scmp.eq.s32.totalorder %s18, 0
      %p106 = por %p104, %p105
      %s107 = ssub.s32 %s19, %s31
      %p108 = scmp.eq.s32.totalorder %s107, 0
      %s110 = sadd.s32 %s109, 1
      %s111 = scalar_select %p108, %s109, %s110
      %p114 = pneg %p108
      %p115 = scmp.eq.s32.totalorder %s12, 1
      %p116 = por %p114, %p115
      %p117 = scmp.ne.s32.totalorder %s109, %s112
      %p118 = scmp.eq.s32.totalorder %s12, 0
      %p119 = por %p117, %p118
      %p120 = scmp.ne.s32.totalorder %s109, %s112
      %p121 = scmp.eq.s32.totalorder %s17, 1
      %p122 = por %p120, %p121
      %p123 = scmp.ne.s32.totalorder %s112, %s113
      %p124 = scmp.eq.s32.totalorder %s17, 0
      %p125 = por %p123, %p124
      %p126 = scmp.ne.s32.totalorder %s112, %s113
      %p127 = scmp.eq.s32.totalorder %s18, 1
      %p128 = por %p126, %p127
      %p130 = scmp.ne.s32.totalorder %s113, %s129
      %p131 = scmp.eq.s32.totalorder %s18, 0
      %p132 = por %p130, %p131
      %p133 = scmp.le.s32.totalorder 1, %s12
      %p134 = scmp.lt.s32.totalorder %s12, 3
      %p135 = pnand %p133, %p134
      %p136 = pneg %p135
      // Predicated region
      $region9: #{general_torch_model_forward.1} parent=5 // pred_check
        _
      $region10: #{general_torch_model_forward.1} parent=5 // pred_check_branch
        %138 = sbr.rel (%p135) target = $region12
      $region11: #{general_torch_model_forward.1} parent=5 // pred_region
        %s139 = ssub.s32 %s12, 1
        // Predicated region
        $region13: #{general_torch_model_forward.1} parent=11 // pred_check
          %p140 = pneg %p99
        $region14: #{general_torch_model_forward.1} parent=11 // pred_check_branch
          %142 = sbr.rel (%p140) target = $region16
        $region15: #{general_torch_model_forward.1} parent=11 // pred_region
          _
        $region16: #{general_torch_model_forward.1} parent=11 // pred_fallthru
          _
      $region12: #{general_torch_model_forward.1} parent=5 // pred_fallthru
        _
      %p143 = scmp.lt.s32.totalorder %s12, 2
      // Predicated region
      $region17: #{general_torch_model_forward.1} parent=5 // pred_check
        %p144 = pneg %p143
      $region18: #{general_torch_model_forward.1} parent=5 // pred_check_branch
        %146 = sbr.rel (%p144) target = $region20
      $region19: #{general_torch_model_forward.1} parent=5 // pred_region
        // Predicated region
        $region21: #{general_torch_model_forward.1} parent=19 // pred_check
          %p147 = pneg %p46
        $region22: #{general_torch_model_forward.1} parent=19 // pred_check_branch
          %149 = sbr.rel (%p147) target = $region24
        $region23: #{general_torch_model_forward.1} parent=19 // pred_region
          %s150 = smul.u32 4, %s20
          %p151 = scmp.lt.s32.totalorder %s19, 0
          %s152 = scalar_select %p151, %s19, 0
          %p153 = scmp.lt.s32.totalorder %s150, 7
          %s154 = scalar_select %p153, %s150, 7
          %s155 = smul.addr %s152, 8
          %s156 = sadd.s32 %s154, %s155
          %s157 = smul.addr %s156, 8
          %s158 = scalar_lea.vmem %s0, %s157
          %s159 = smul.u32 4, %s20
        $region24: #{general_torch_model_forward.1} parent=19 // pred_fallthru
          _
        // Predicated region
        $region25: #{general_torch_model_forward.1} parent=19 // pred_check
          %p160 = pneg %p72
        $region26: #{general_torch_model_forward.1} parent=19 // pred_check_branch
          %162 = sbr.rel (%p160) target = $region28
        $region27: #{general_torch_model_forward.1} parent=19 // pred_region
          %s163 = sand.u32 %s62, 1
          %s164 = scalar_lea.sflag [#allocation4], %s163
          %s165 = sand.u32 %s62, 1
          %s166 = smul.addr %s165, 256
          %s167 = scalar_lea.vmem [#allocation3], %s166
          %s168 = smul.u32 64, %s20
          %s170 = ssub.s32 4096, 4096
          %171 = vsyncadd %s164, %s170
          %s172 = smul.addr %s168, 64
          %s173 = scalar_lea.hbm %s1, %s172
          %s174 = sshll.u32 %s167, 4
          %s175 = int_to_ptr.vmem [resolvable:$true] %s174
          %180 = dma.hbm_to_vmem [thread:$0]  %s173, 4096, %s175, %s164, 64, 64, 4
        $region28: #{general_torch_model_forward.1} parent=19 // pred_fallthru
          _
      $region20: #{general_torch_model_forward.1} parent=5 // pred_fallthru
        _
      %p181 = scmp.le.s32.totalorder 1, %s12
      %p182 = scmp.lt.s32.totalorder %s12, 3
      %p183 = pnand %p181, %p182
      %p184 = pneg %p183
      // Predicated region
      $region29: #{general_torch_model_forward.1} parent=5 // pred_check
        _
      $region30: #{general_torch_model_forward.1} parent=5 // pred_check_branch
        %186 = sbr.rel (%p183) target = $region32
      $region31: #{general_torch_model_forward.1} parent=5 // pred_region
        %s187 = ssub.s32 %s12, 1
        %s188 = sand.u32 %s65, 1
        %s189 = scalar_lea.sflag [#allocation4], %s188
        %s190 = sand.u32 %s65, 1
        %s191 = smul.addr %s190, 256
        %s192 = scalar_lea.vmem [#allocation3], %s191
        // Predicated region
        $region33: #{general_torch_model_forward.1} parent=31 // pred_check
          %p193 = pneg %p78
        $region34: #{general_torch_model_forward.1} parent=31 // pred_check_branch
          %195 = sbr.rel (%p193) target = $region36
        $region35: #{general_torch_model_forward.1} parent=31 // pred_region
          %196 = dma.done %s189, 4096
        $region36: #{general_torch_model_forward.1} parent=31 // pred_fallthru
          _
        %s197 = smul.u32 4, %s22
        %p198 = scmp.lt.s32.totalorder %s21, 0
        %s199 = scalar_select %p198, %s21, 0
        %p200 = scmp.lt.s32.totalorder %s197, 7
        %s201 = scalar_select %p200, %s197, 7
        %s202 = smul.addr %s199, 8
        %s203 = sadd.s32 %s201, %s202
        %s204 = smul.addr %s203, 8
        %s205 = scalar_lea.vmem %s0, %s204
        %p206 = pneg %p52
        %p207 = pneg %p49
        %s208 = sand.u32 %s65, 1
        %s209 = scalar_lea.sflag [#allocation4], %s208
        %s210 = sand.u32 %s65, 1
        %s211 = smul.addr %s210, 256
        %s212 = scalar_lea.vmem [#allocation3], %s211
        %p213 = pneg %p78
        %p214 = pneg %p75
        %p215 = pneg %p99
        %p216 = pneg %p96
        %p217 = pneg %p125
        %p218 = pneg %p122
        %p219 = scmp.lt.s32.totalorder %s21, 0
        %s220 = scalar_select %p219, %s21, 0
        %s221 = smul.addr %s220, 8
        %s222 = scalar_lea.vmem %s3, %s221
        %s223 = smul.u32 4, %s22
        %p224 = scmp.lt.s32.totalorder %s21, 0
        %s225 = scalar_select %p224, %s21, 0
        %p226 = scmp.lt.s32.totalorder %s223, 7
        %s227 = scalar_select %p226, %s223, 7
        %s228 = smul.addr %s225, 8
        %s229 = sadd.s32 %s227, %s228
        %s230 = smul.addr %s229, 8
        %s231 = scalar_lea.vmem %s0, %s230
        %s232 = smul.u32 4, %s22
        %s233 = smul.u32 64, %s22
        %p234 = scmp.lt.s32.totalorder %s21, 0
        %s235 = scalar_select %p234, %s21, 0
        %s236 = smul.addr %s235, 8
        %s237 = scalar_lea.vmem %s3, %s236
        %p239 = scmp.eq.s32.totalorder %s22, 0
        // Predicated region
        $region37: #{general_torch_model_forward.1} parent=31 // pred_check
          %p240 = pneg %p239
        $region38: #{general_torch_model_forward.1} parent=31 // pred_check_branch
          %242 = sbr.rel (%p240) target = $region40
        $region39: #{general_torch_model_forward.1} parent=31 // pred_region
          %243 = vst [vmem:[#allocation2] sm:$0xff] 0.0
        $region40: #{general_torch_model_forward.1} parent=31 // pred_fallthru
          _
        %v244 = vld [vmem:[#allocation2] sm:$0xff]
        %v245 = vld [vmem:[%s231] sm:$0xff]
        %v246 = vld [vmem:[%s231 + $0x8] sm:$0xff]
        %v247 = vld [vmem:[%s231 + $0x10] sm:$0xff]
        %v248 = vld [vmem:[%s231 + $0x18] sm:$0xff]
        %v249 = vpack.c.bf16 %v245, %v245
        %v250 = vpack.c.bf16 %v246, %v246
        %v251 = vpack.c.bf16 %v247, %v247
        %v252 = vpack.c.bf16 %v248, %v248
        %v253 = vld [vmem:[%s192] sm:$0xf]
        %v254 = vld [vmem:[%s192 + $0x4] sm:$0xf]
        %v255 = vld [vmem:[%s192 + $0x8] sm:$0xf]
        %v256 = vld [vmem:[%s192 + $0xc] sm:$0xf]
        %v257 = vld [vmem:[%s192 + $0x10] sm:$0xf]
        %v258 = vld [vmem:[%s192 + $0x14] sm:$0xf]
        %v259 = vld [vmem:[%s192 + $0x18] sm:$0xf]
        %v260 = vld [vmem:[%s192 + $0x1c] sm:$0xf]
        %v261 = vld [vmem:[%s192 + $0x20] sm:$0xf]
        %v262 = vld [vmem:[%s192 + $0x24] sm:$0xf]
        %v263 = vld [vmem:[%s192 + $0x28] sm:$0xf]
        %v264 = vld [vmem:[%s192 + $0x2c] sm:$0xf]
        %v265 = vld [vmem:[%s192 + $0x30] sm:$0xf]
        %v266 = vld [vmem:[%s192 + $0x34] sm:$0xf]
        %v267 = vld [vmem:[%s192 + $0x38] sm:$0xf]
        %v268 = vld [vmem:[%s192 + $0x3c] sm:$0xf]
        %v269 = vld [vmem:[%s192 + $0x40] sm:$0xf]
        %v270 = vld [vmem:[%s192 + $0x44] sm:$0xf]
        %v271 = vld [vmem:[%s192 + $0x48] sm:$0xf]
        %v272 = vld [vmem:[%s192 + $0x4c] sm:$0xf]
        %v273 = vld [vmem:[%s192 + $0x50] sm:$0xf]
        %v274 = vld [vmem:[%s192 + $0x54] sm:$0xf]
        %v275 = vld [vmem:[%s192 + $0x58] sm:$0xf]
        %v276 = vld [vmem:[%s192 + $0x5c] sm:$0xf]
        %v277 = vld [vmem:[%s192 + $0x60] sm:$0xf]
        %v278 = vld [vmem:[%s192 + $0x64] sm:$0xf]
        %v279 = vld [vmem:[%s192 + $0x68] sm:$0xf]
        %v280 = vld [vmem:[%s192 + $0x6c] sm:$0xf]
        %v281 = vld [vmem:[%s192 + $0x70] sm:$0xf]
        %v282 = vld [vmem:[%s192 + $0x74] sm:$0xf]
        %v283 = vld [vmem:[%s192 + $0x78] sm:$0xf]
        %v284 = vld [vmem:[%s192 + $0x7c] sm:$0xf]
        %v285 = vld [vmem:[%s192 + $0x80] sm:$0xf]
        %v286 = vld [vmem:[%s192 + $0x84] sm:$0xf]
        %v287 = vld [vmem:[%s192 + $0x88] sm:$0xf]
        %v288 = vld [vmem:[%s192 + $0x8c] sm:$0xf]
        %v289 = vld [vmem:[%s192 + $0x90] sm:$0xf]
        %v290 = vld [vmem:[%s192 + $0x94] sm:$0xf]
        %v291 = vld [vmem:[%s192 + $0x98] sm:$0xf]
        %v292 = vld [vmem:[%s192 + $0x9c] sm:$0xf]
        %v293 = vld [vmem:[%s192 + $0xa0] sm:$0xf]
        %v294 = vld [vmem:[%s192 + $0xa4] sm:$0xf]
        %v295 = vld [vmem:[%s192 + $0xa8] sm:$0xf]
        %v296 = vld [vmem:[%s192 + $0xac] sm:$0xf]
        %v297 = vld [vmem:[%s192 + $0xb0] sm:$0xf]
        %v298 = vld [vmem:[%s192 + $0xb4] sm:$0xf]
        %v299 = vld [vmem:[%s192 + $0xb8] sm:$0xf]
        %v300 = vld [vmem:[%s192 + $0xbc] sm:$0xf]
        %v301 = vld [vmem:[%s192 + $0xc0] sm:$0xf]
        %v302 = vld [vmem:[%s192 + $0xc4] sm:$0xf]
        %v303 = vld [vmem:[%s192 + $0xc8] sm:$0xf]
        %v304 = vld [vmem:[%s192 + $0xcc] sm:$0xf]
        %v305 = vld [vmem:[%s192 + $0xd0] sm:$0xf]
        %v306 = vld [vmem:[%s192 + $0xd4] sm:$0xf]
        %v307 = vld [vmem:[%s192 + $0xd8] sm:$0xf]
        %v308 = vld [vmem:[%s192 + $0xdc] sm:$0xf]
        %v309 = vld [vmem:[%s192 + $0xe0] sm:$0xf]
        %v310 = vld [vmem:[%s192 + $0xe4] sm:$0xf]
        %v311 = vld [vmem:[%s192 + $0xe8] sm:$0xf]
        %v312 = vld [vmem:[%s192 + $0xec] sm:$0xf]
        %v313 = vld [vmem:[%s192 + $0xf0] sm:$0xf]
        %v314 = vld [vmem:[%s192 + $0xf4] sm:$0xf]
        %v315 = vld [vmem:[%s192 + $0xf8] sm:$0xf]
        %v316 = vld [vmem:[%s192 + $0xfc] sm:$0xf]
        %v381 = vunpack.c.l.b16 %v253
        %v382 = vunpack.c.l.b16 %v254
        %v383 = vunpack.c.l.b16 %v255
        %v384 = vunpack.c.l.b16 %v256
        %v385 = vunpack.c.l.b16 %v257
        %v386 = vunpack.c.l.b16 %v258
        %v387 = vunpack.c.l.b16 %v259
        %v388 = vunpack.c.l.b16 %v260
        %v389 = vunpack.c.l.b16 %v261
        %v390 = vunpack.c.l.b16 %v262
        %v391 = vunpack.c.l.b16 %v263
        %v392 = vunpack.c.l.b16 %v264
        %v393 = vunpack.c.l.b16 %v265
        %v394 = vunpack.c.l.b16 %v266
        %v395 = vunpack.c.l.b16 %v267
        %v396 = vunpack.c.l.b16 %v268
        %v397 = vunpack.c.l.b16 %v269
        %v398 = vunpack.c.l.b16 %v270
        %v399 = vunpack.c.l.b16 %v271
        %v400 = vunpack.c.l.b16 %v272
        %v401 = vunpack.c.l.b16 %v273
        %v402 = vunpack.c.l.b16 %v274
        %v403 = vunpack.c.l.b16 %v275
        %v404 = vunpack.c.l.b16 %v276
        %v405 = vunpack.c.l.b16 %v277
        %v406 = vunpack.c.l.b16 %v278
        %v407 = vunpack.c.l.b16 %v279
        %v408 = vunpack.c.l.b16 %v280
        %v409 = vunpack.c.l.b16 %v281
        %v410 = vunpack.c.l.b16 %v282
        %v411 = vunpack.c.l.b16 %v283
        %v412 = vunpack.c.l.b16 %v284
        %v413 = vunpack.c.l.b16 %v285
        %v414 = vunpack.c.l.b16 %v286
        %v415 = vunpack.c.l.b16 %v287
        %v416 = vunpack.c.l.b16 %v288
        %v417 = vunpack.c.l.b16 %v289
        %v418 = vunpack.c.l.b16 %v290
        %v419 = vunpack.c.l.b16 %v291
        %v420 = vunpack.c.l.b16 %v292
        %v421 = vunpack.c.l.b16 %v293
        %v422 = vunpack.c.l.b16 %v294
        %v423 = vunpack.c.l.b16 %v295
        %v424 = vunpack.c.l.b16 %v296
        %v425 = vunpack.c.l.b16 %v297
        %v426 = vunpack.c.l.b16 %v298
        %v427 = vunpack.c.l.b16 %v299
        %v428 = vunpack.c.l.b16 %v300
        %v429 = vunpack.c.l.b16 %v301
        %v430 = vunpack.c.l.b16 %v302
        %v431 = vunpack.c.l.b16 %v303
        %v432 = vunpack.c.l.b16 %v304
        %v433 = vunpack.c.l.b16 %v305
        %v434 = vunpack.c.l.b16 %v306
        %v435 = vunpack.c.l.b16 %v307
        %v436 = vunpack.c.l.b16 %v308
        %v437 = vunpack.c.l.b16 %v309
        %v438 = vunpack.c.l.b16 %v310
        %v439 = vunpack.c.l.b16 %v311
        %v440 = vunpack.c.l.b16 %v312
        %v441 = vunpack.c.l.b16 %v313
        %v442 = vunpack.c.l.b16 %v314
        %v443 = vunpack.c.l.b16 %v315
        %v444 = vunpack.c.l.b16 %v316
        %v445 = vpack.c.b16 %v382, %v381
        %v446 = vpack.c.b16 %v384, %v383
        %v447 = vpack.c.b16 %v386, %v385
        %v448 = vpack.c.b16 %v388, %v387
        %v449 = vpack.c.b16 %v390, %v389
        %v450 = vpack.c.b16 %v392, %v391
        %v451 = vpack.c.b16 %v394, %v393
        %v452 = vpack.c.b16 %v396, %v395
        %v453 = vpack.c.b16 %v398, %v397
        %v454 = vpack.c.b16 %v400, %v399
        %v455 = vpack.c.b16 %v402, %v401
        %v456 = vpack.c.b16 %v404, %v403
        %v457 = vpack.c.b16 %v406, %v405
        %v458 = vpack.c.b16 %v408, %v407
        %v459 = vpack.c.b16 %v410, %v409
        %v460 = vpack.c.b16 %v412, %v411
        %v461 = vpack.c.b16 %v414, %v413
        %v462 = vpack.c.b16 %v416, %v415
        %v463 = vpack.c.b16 %v418, %v417
        %v464 = vpack.c.b16 %v420, %v419
        %v465 = vpack.c.b16 %v422, %v421
        %v466 = vpack.c.b16 %v424, %v423
        %v467 = vpack.c.b16 %v426, %v425
        %v468 = vpack.c.b16 %v428, %v427
        %v469 = vpack.c.b16 %v430, %v429
        %v470 = vpack.c.b16 %v432, %v431
        %v471 = vpack.c.b16 %v434, %v433
        %v472 = vpack.c.b16 %v436, %v435
        %v473 = vpack.c.b16 %v438, %v437
        %v474 = vpack.c.b16 %v440, %v439
        %v475 = vpack.c.b16 %v442, %v441
        %v476 = vpack.c.b16 %v444, %v443
        %509 = vmatprep.subr.bf16.mxu0 0
        %510 = vmatpush1.bf16.msra.mxu0 %v445
        %511 = vmatprep.subr.bf16.mxu0 0
        %512 = vmatpush1.bf16.msra.mxu0 %v446
        %513 = vmatprep.subr.bf16.mxu0 0
        %514 = vmatpush1.bf16.msra.mxu0 %v447
        %515 = vmatprep.subr.bf16.mxu0 0
        %516 = vmatpush1.bf16.msra.mxu0 %v448
        %517 = vmatprep.subr.bf16.mxu0 0
        %518 = vmatpush1.bf16.msra.mxu0 %v449
        %519 = vmatprep.subr.bf16.mxu0 0
        %520 = vmatpush1.bf16.msra.mxu0 %v450
        %521 = vmatprep.subr.bf16.mxu0 0
        %522 = vmatpush1.bf16.msra.mxu0 %v451
        %523 = vmatprep.subr.bf16.mxu0 0
        %524 = vmatpush1.bf16.msra.mxu0 %v452
        %525 = vmatprep.subr.bf16.mxu0 0
        %526 = vmatpush1.bf16.msra.mxu0 %v453
        %527 = vmatprep.subr.bf16.mxu0 0
        %528 = vmatpush1.bf16.msra.mxu0 %v454
        %529 = vmatprep.subr.bf16.mxu0 0
        %530 = vmatpush1.bf16.msra.mxu0 %v455
        %531 = vmatprep.subr.bf16.mxu0 0
        %532 = vmatpush1.bf16.msra.mxu0 %v456
        %533 = vmatprep.subr.bf16.mxu0 0
        %534 = vmatpush1.bf16.msra.mxu0 %v457
        %535 = vmatprep.subr.bf16.mxu0 0
        %536 = vmatpush1.bf16.msra.mxu0 %v458
        %537 = vmatprep.subr.bf16.mxu0 0
        %538 = vmatpush1.bf16.msra.mxu0 %v459
        %539 = vmatprep.subr.bf16.mxu0 0
        %540 = vmatpush1.bf16.msra.mxu0 %v460
        %541 = vmatprep.mubr.bf16.mxu0 %v250
        %542 = vmatmul.mubr.bf16.gmra.mrb[0].mxu0 %v249
        %v543 = vpop.f32.mrb[0].mxu0
        %v544 = vadd.f32 0.0, %v543
        %v545 = vpop.f32.mrb[0].mxu0
        %v546 = vpop.f32.mrb[0].mxu0
        %v547 = vpop.f32.mrb[0].mxu0
        %548 = vdwg.mxu0
        %549 = vmatprep.subr.bf16.mxu0 0
        %550 = vmatpush1.bf16.msra.mxu0 %v461
        %551 = vmatprep.subr.bf16.mxu0 0
        %552 = vmatpush1.bf16.msra.mxu0 %v462
        %553 = vmatprep.subr.bf16.mxu0 0
        %554 = vmatpush1.bf16.msra.mxu0 %v463
        %555 = vmatprep.subr.bf16.mxu0 0
        %556 = vmatpush1.bf16.msra.mxu0 %v464
        %557 = vmatprep.subr.bf16.mxu0 0
        %558 = vmatpush1.bf16.msra.mxu0 %v465
        %559 = vmatprep.subr.bf16.mxu0 0
        %560 = vmatpush1.bf16.msra.mxu0 %v466
        %561 = vmatprep.subr.bf16.mxu0 0
        %562 = vmatpush1.bf16.msra.mxu0 %v467
        %563 = vmatprep.subr.bf16.mxu0 0
        %564 = vmatpush1.bf16.msra.mxu0 %v468
        %565 = vmatprep.subr.bf16.mxu0 0
        %566 = vmatpush1.bf16.msra.mxu0 %v469
        %567 = vmatprep.subr.bf16.mxu0 0
        %568 = vmatpush1.bf16.msra.mxu0 %v470
        %569 = vmatprep.subr.bf16.mxu0 0
        %570 = vmatpush1.bf16.msra.mxu0 %v471
        %571 = vmatprep.subr.bf16.mxu0 0
        %572 = vmatpush1.bf16.msra.mxu0 %v472
        %573 = vmatprep.subr.bf16.mxu0 0
        %574 = vmatpush1.bf16.msra.mxu0 %v473
        %575 = vmatprep.subr.bf16.mxu0 0
        %576 = vmatpush1.bf16.msra.mxu0 %v474
        %577 = vmatprep.subr.bf16.mxu0 0
        %578 = vmatpush1.bf16.msra.mxu0 %v475
        %579 = vmatprep.subr.bf16.mxu0 0
        %580 = vmatpush1.bf16.msra.mxu0 %v476
        %581 = vmatprep.mubr.bf16.mxu0 %v252
        %582 = vmatmul.mubr.bf16.gmra.mrb[0].mxu0 %v251
        %v583 = vpop.f32.mrb[0].mxu0
        %v584 = vadd.f32 %v544, %v583
        %v585 = vpop.f32.mrb[0].mxu0
        %v586 = vpop.f32.mrb[0].mxu0
        %v587 = vpop.f32.mrb[0].mxu0
        %588 = vdwg.mxu0
        %v589 = vadd.f32 %v244, %v584
        %590 = vst [vmem:[#allocation2] sm:$0xff] %v589
        %p591 = scmp.eq.s32.totalorder %s22, 1
        // Predicated region
        $region41: #{general_torch_model_forward.1} parent=31 // pred_check
          %p592 = pneg %p591
        $region42: #{general_torch_model_forward.1} parent=31 // pred_check_branch
          %594 = sbr.rel (%p592) target = $region44
        $region43: #{general_torch_model_forward.1} parent=31 // pred_region
          %v595 = vld [vmem:[#allocation2] sm:$0xff]
          %v596 = vld [vmem:[%s2] sm:$0x1]
          %v598 = vlaneseq
          %v599 = vshrl.u32 %v598, 7
          %v600 = vsub.s32 0, %v599
          %v601 = vrot.slane %v596, %v600
          %v603 = vadd.f32 %v595, %v601
          %604 = vst [vmem:[%s237] sm:$0xff] %v603
        $region44: #{general_torch_model_forward.1} parent=31 // pred_fallthru
          _
        %p605 = scmp.lt.s32.totalorder %s21, 0
        %s606 = scalar_select %p605, %s21, 0
        %s607 = smul.addr %s606, 8
        %s608 = scalar_lea.vmem %s3, %s607
        // Predicated region
        $region45: #{general_torch_model_forward.1} parent=31 // pred_check
          %p609 = pneg %p122
        $region46: #{general_torch_model_forward.1} parent=31 // pred_check_branch
          %611 = sbr.rel (%p609) target = $region48
        $region47: #{general_torch_model_forward.1} parent=31 // pred_region
          _
        $region48: #{general_torch_model_forward.1} parent=31 // pred_fallthru
          _
        // Predicated region
        $region49: #{general_torch_model_forward.1} parent=31 // pred_check
          %p612 = pneg %p122
        $region50: #{general_torch_model_forward.1} parent=31 // pred_check_branch
          %614 = sbr.rel (%p612) target = $region52
        $region51: #{general_torch_model_forward.1} parent=31 // pred_region
          %p615 = scmp.lt.s32.totalorder %s21, 0
          %s616 = scalar_select %p615, %s21, 0
          %s617 = smul.addr %s616, 8
          %s618 = scalar_lea.vmem %s3, %s617
        $region52: #{general_torch_model_forward.1} parent=31 // pred_fallthru
          _
      $region32: #{general_torch_model_forward.1} parent=5 // pred_fallthru
        _
      %p619 = scmp.le.s32.totalorder 2, %s12
      // Predicated region
      $region53: #{general_torch_model_forward.1} parent=5 // pred_check
        %p620 = pneg %p619
      $region54: #{general_torch_model_forward.1} parent=5 // pred_check_branch
        %622 = sbr.rel (%p620) target = $region56
      $region55: #{general_torch_model_forward.1} parent=5 // pred_region
        %s623 = ssub.s32 %s12, 2
      $region56: #{general_torch_model_forward.1} parent=5 // pred_fallthru
        _
    $region6: #{general_torch_model_forward.1} parent=1 // loop_footer
      %s16 = sadd.s32 1, %s12
    $region7: #{general_torch_model_forward.1} parent=1 // loop_footer_branch
      %11 = sbr.rel target = $region3
    $region8: #{general_torch_model_forward.1} parent=1 // loop_exit
      _
    %624 = vsyncpa [#allocation4], 1
    %s625 = scalar_lea.sflag [#allocation4], 1
    %626 = vsyncpa %s625, 1

</llo_original>
